<compile_context>
chip_gen: v6e
topology: v6e:2x2x1
jax: 0.10.0
libtpu: 0.0.40
codegen_flags: <defaults>
</compile_context>

<pallas_src>
import jax
import jax.numpy as jnp
from jax.experimental import pallas as pl
from jax.experimental.pallas import tpu as pltpu


def _dnn_kernel(xa_ref, wa_ref, o_ref):
    # xa_ref: (B, IN+1)   VMEM  (x augmented with a ones column)
    # wa_ref: (IN+1, OUT) VMEM  (W^T with the bias row appended)
    # o_ref:  (B, OUT)    VMEM
    xa = xa_ref[...]
    wa = wa_ref[...]

    # K is tiny and static: unrolled VPU contraction, no MXU.
    # (B,1) * (1,OUT) broadcasts to (B,OUT).
    # NOTE: if IN ever grows, prefer a stride-0 ds load of the weight row
    # (wa_ref[pl.ds(k, B, stride=0), :]) so the sublane broadcast rides the
    # vld, or move to the MXU entirely (see TODO above).
    k_dim = xa_ref.shape[1]
    acc = xa[:, 0:1] * wa[0:1, :]
    for k in range(1, k_dim):
        acc = acc + xa[:, k:k + 1] * wa[k:k + 1, :]

    o_ref[...] = jnp.maximum(acc, 0.0).astype(o_ref.dtype)


@jax.jit
def dnn_forward(x, weight, bias_linear):
    """Forward pass matching DNN: relu(x @ weight.T + bias_linear + zeros).

    x:           (B, IN)   float32
    weight:      (OUT, IN) float32  (PyTorch nn.Linear layout)
    bias_linear: (OUT,)    float32

    The module's extra `self.bias` is statically zeros([3]); it is dropped at
    trace time with no numerical effect.
    """
    B, IN = x.shape
    OUT = weight.shape[0]

    # Affine augmentation (fuses under jit): fold the bias into the weight.
    wa = jnp.concatenate(
        [jnp.asarray(weight).T, bias_linear.reshape(1, OUT)], axis=0
    )  # (IN+1, OUT)
    xa = jnp.concatenate(
        [x, jnp.ones((B, 1), dtype=x.dtype)], axis=1
    )  # (B, IN+1)

    flops = 2 * B * (IN + 1) * OUT
    bytes_accessed = 4 * (B * (IN + 1) + (IN + 1) * OUT + B * OUT)

    return pl.pallas_call(
        _dnn_kernel,
        out_shape=jax.ShapeDtypeStruct((B, OUT), x.dtype),
        in_specs=[
            pl.BlockSpec(memory_space=pltpu.MemorySpace.VMEM),  # x_aug
            pl.BlockSpec(memory_space=pltpu.MemorySpace.VMEM),  # w_aug
        ],
        out_specs=pl.BlockSpec(memory_space=pltpu.MemorySpace.VMEM),
        cost_estimate=pl.CostEstimate(
            flops=flops, transcendentals=0, bytes_accessed=bytes_accessed
        ),
    )(xa, wa)


if __name__ == "__main__":
    key = jax.random.PRNGKey(0)
    k_x, k_w, k_b = jax.random.split(key, 3)

    B, IN, OUT = 8, 2, 3

    # Deterministic example inputs / parameters (shapes from nn.Linear(2, 3)).
    x = jax.random.normal(k_x, (B, IN), dtype=jnp.float32)
    weight = jax.random.normal(k_w, (OUT, IN), dtype=jnp.float32) * 0.5
    bias_linear = jax.random.normal(k_b, (OUT,), dtype=jnp.float32) * 0.1
    # self.bias = torch.zeros([3]) -> statically zero, dropped at trace time.

    y = dnn_forward(x, weight, bias_linear)
    jax.block_until_ready(y)

    # Reference check in plain JAX (same math as the PyTorch forward).
    y_ref = jnp.maximum(x @ weight.T + bias_linear, 0.0)
    assert jnp.allclose(y, y_ref, atol=1e-5), "mismatch vs reference"

    print("KERNEL_OK")
</pallas_src>

<mosaic_0001>
module attributes {stable_mosaic.version = 11 : i64} {
  func.func @_dnn_kernel(%arg0: memref<8x3xf32, #tpu.memory_space<vmem>>, %arg1: memref<3x3xf32, #tpu.memory_space<vmem>>, %arg2: memref<8x3xf32, #tpu.memory_space<vmem>>) attributes {dimension_semantics = [], scalar_prefetch = 0 : i64, scratch_operands = 0 : i64, tpu.core_type = #tpu.core_type<tc>} {
    %c0 = arith.constant 0 : index
    %c0_0 = arith.constant 0 : index
    %0 = vector.load %arg0[%c0, %c0_0] : memref<8x3xf32, #tpu.memory_space<vmem>>, vector<8x3xf32>
    %c0_1 = arith.constant 0 : index
    %c0_2 = arith.constant 0 : index
    %1 = vector.load %arg1[%c0_1, %c0_2] : memref<3x3xf32, #tpu.memory_space<vmem>>, vector<3x3xf32>
    %2 = vector.extract_strided_slice %0 {offsets = [0, 0], sizes = [8, 1], strides = [1, 1]} : vector<8x3xf32> to vector<8x1xf32>
    %3 = vector.extract_strided_slice %1 {offsets = [0, 0], sizes = [1, 3], strides = [1, 1]} : vector<3x3xf32> to vector<1x3xf32>
    %4 = vector.broadcast %2 : vector<8x1xf32> to vector<8x3xf32>
    %5 = vector.broadcast %3 : vector<1x3xf32> to vector<8x3xf32>
    %6 = arith.mulf %4, %5 : vector<8x3xf32>
    %7 = vector.extract_strided_slice %0 {offsets = [0, 1], sizes = [8, 1], strides = [1, 1]} : vector<8x3xf32> to vector<8x1xf32>
    %8 = vector.extract_strided_slice %1 {offsets = [1, 0], sizes = [1, 3], strides = [1, 1]} : vector<3x3xf32> to vector<1x3xf32>
    %9 = vector.broadcast %7 : vector<8x1xf32> to vector<8x3xf32>
    %10 = vector.broadcast %8 : vector<1x3xf32> to vector<8x3xf32>
    %11 = arith.mulf %9, %10 : vector<8x3xf32>
    %12 = arith.addf %6, %11 : vector<8x3xf32>
    %13 = vector.extract_strided_slice %0 {offsets = [0, 2], sizes = [8, 1], strides = [1, 1]} : vector<8x3xf32> to vector<8x1xf32>
    %14 = vector.extract_strided_slice %1 {offsets = [2, 0], sizes = [1, 3], strides = [1, 1]} : vector<3x3xf32> to vector<1x3xf32>
    %15 = vector.broadcast %13 : vector<8x1xf32> to vector<8x3xf32>
    %16 = vector.broadcast %14 : vector<1x3xf32> to vector<8x3xf32>
    %17 = arith.mulf %15, %16 : vector<8x3xf32>
    %18 = arith.addf %12, %17 : vector<8x3xf32>
    %cst = arith.constant 0.000000e+00 : f32
    %19 = vector.broadcast %cst : f32 to vector<8x3xf32>
    %20 = arith.maximumf %18, %19 : vector<8x3xf32>
    %c0_3 = arith.constant 0 : index
    %c0_4 = arith.constant 0 : index
    %21 = vector.load %arg2[%c0_3, %c0_4] : memref<8x3xf32, #tpu.memory_space<vmem>>, vector<8x3xf32>
    tpu.vector_store %arg2[%c0_3, %c0_4], %20 {strides = array<i32>} : memref<8x3xf32, #tpu.memory_space<vmem>>, vector<8x3xf32>,
    return
  }
}

</mosaic_0001>

<llo_original>
// kernel: dnn_forward.1
$region0: #{dnn_forward.1}
  #allocation0 [shape = 'u32[]', space=smem, size = 0x4, offset = 0x4, fixed_abs, tag = 'smem constant byte address 0x4 - core index']
  #allocation1 [shape = 'u32[144,128]{1,0:T(1,128)}', space=vmem, size = 0x12000, scoped, tag = 'internal scratch']
  %s0 = inlined_call_operand.vmem [shape: f32[8,3], index: 0, kind: input, shape index: {}]
  %s1 = inlined_call_operand.vmem [shape: f32[3,3], index: 1, kind: input, shape index: {}]
  %s2 = inlined_call_operand.vmem [shape: f32[8,3], index: 2, kind: output, shape index: {}]
  %s3 = sld [smem:[#allocation0]]
  $region18: #{dnn_forward.1} parent=0
    _
  %s5 = ssub.s32 1, %s3
  %s6 = scalar_select 0, %s5, %s3
  // Predicated region
  $region2: #{dnn_forward.1} parent=0 // pred_check
    _
  $region3: #{dnn_forward.1} parent=0 // pred_check_branch
    %8 = sbr.rel (0) target = $region5
  $region4: #{dnn_forward.1} parent=0 // pred_region
    _
  $region5: #{dnn_forward.1} parent=0 // pred_fallthru
    _
  // Predicated region
  $region6: #{dnn_forward.1} parent=0 // pred_check
    _
  $region7: #{dnn_forward.1} parent=0 // pred_check_branch
    %10 = sbr.rel (0) target = $region9
  $region8: #{dnn_forward.1} parent=0 // pred_region
    _
  $region9: #{dnn_forward.1} parent=0 // pred_fallthru
    _
  %v11 = vld [vmem:[%s0] sm:$0xff]
  %v12 = vld [vmem:[%s1] sm:$0x7]
  %14 = vset.pattern.permute.xlu0 0
  %15 = vperm.xlu0 %14, %v11
  %v16 = vpop.permute.xlu0 %15
  %v18 = vlaneseq
  %v19 = vshrl.u32 %v18, 7
  %v20 = vsub.s32 0, %v19
  %v21 = vrot.slane %v12, %v20
  %v22 = vmul.f32 %v16, %v21
  %23 = vset.pattern.permute.xlu0 1
  %24 = vperm.xlu0 %23, %v11
  %v25 = vpop.permute.xlu0 %24
  %v27 = vlaneseq
  %v28 = vshrl.u32 %v27, 7
  %v29 = vsub.s32 1, %v28
  %v30 = vrot.slane %v12, %v29
  %v31 = vmul.f32 %v25, %v30
  %v32 = vadd.f32 %v22, %v31
  %33 = vset.pattern.permute.xlu0 2
  %34 = vperm.xlu0 %33, %v11
  %v35 = vpop.permute.xlu0 %34
  %v37 = vlaneseq
  %v38 = vshrl.u32 %v37, 7
  %v39 = vsub.s32 2, %v38
  %v40 = vrot.slane %v12, %v39
  %v41 = vmul.f32 %v35, %v40
  %v42 = vadd.f32 %v32, %v41
  %v43 = vmax.f32 %v42, 0.0
  %vm44 = vcmask 23552
  %45 = vst.msk [vmem:[%s2] sm:$0xff] %vm44, %v43
  // Predicated region
  $region10: #{dnn_forward.1} parent=0 // pred_check
    _
  $region11: #{dnn_forward.1} parent=0 // pred_check_branch
    %47 = sbr.rel (0) target = $region13
  $region12: #{dnn_forward.1} parent=0 // pred_region
    _
  $region13: #{dnn_forward.1} parent=0 // pred_fallthru
    _
  // Predicated region
  $region14: #{dnn_forward.1} parent=0 // pred_check
    _
  $region15: #{dnn_forward.1} parent=0 // pred_check_branch
    %49 = sbr.rel (0) target = $region17
  $region16: #{dnn_forward.1} parent=0 // pred_region
    _
  $region17: #{dnn_forward.1} parent=0 // pred_fallthru
    _

</llo_original>
